<compile_context>
chip_gen: v7x
topology: tpu7x:2x2x1
jax: 0.10.0
libtpu: 0.0.40
codegen_flags: <defaults>
</compile_context>

<pallas_src>
import functools

import jax
import jax.numpy as jnp
from jax import lax
from jax.experimental import pallas as pl
from jax.experimental.pallas import tpu as pltpu


# -------------------------------------------------------------------------------------------
# Kernel 1: router + capacity bookkeeping (sequential over token tiles).
# -------------------------------------------------------------------------------------------
def _router_kernel(capacity,
                   hs_ref,       # (TT, H) f32   token tile
                   gate_wt_ref,  # (H, E)  f32   pre-transposed router weight
                   gate_b_ref,   # (1, E)  f32
                   scale_ref,    # (TT, 1) f32   output: keep * max softmax prob
                   tril_ref,     # (TT, TT) bf16 scratch, built once
                   count_ref):   # (1, E)  f32   scratch, carried per-expert token count
    tt = hs_ref.shape[0]
    E = gate_b_ref.shape[1]

    @pl.when(pl.program_id(0) == 0)
    def _():
        count_ref[...] = jnp.zeros_like(count_ref)
        r = lax.broadcasted_iota(jnp.int32, (tt, tt), 0)
        c = lax.broadcasted_iota(jnp.int32, (tt, tt), 1)
        tril_ref[...] = (r >= c).astype(jnp.bfloat16)

    hs = hs_ref[...]
    # TODO(synk): pass precision=lax.Precision.HIGHEST if exact f32 routing parity is required;
    # with a single physical expert a near-tie flip only perturbs the combine weight slightly.
    logits = jnp.dot(hs, gate_wt_ref[...],
                     preferred_element_type=jnp.float32) + gate_b_ref[...]
    lmax = jnp.max(logits, axis=1, keepdims=True)
    denom = jnp.sum(jnp.exp(logits - lmax), axis=1, keepdims=True)
    p_best = pl.reciprocal(denom, approx=True)                    # max softmax probability

    lane = lax.broadcasted_iota(jnp.int32, (tt, E), 1)
    best = jnp.min(jnp.where(logits == lmax, lane, E), axis=1, keepdims=True)  # first argmax
    onehot = (lane == best).astype(jnp.float32)                   # (TT, E)

    # Exclusive per-expert cumulative count = carried count + within-tile inclusive cumsum - 1.
    # Within-tile cumsum via lower-triangular matmul; bf16 operands are exact for 0/1 data with
    # f32 accumulation.
    within = jnp.dot(tril_ref[...], onehot.astype(jnp.bfloat16),
                     preferred_element_type=jnp.float32)          # (TT, E)
    loc = count_ref[...] + within - 1.0
    loc_tok = jnp.sum(loc * onehot, axis=1, keepdims=True)        # slot of the chosen expert
    keep = (loc_tok < float(capacity)).astype(jnp.float32)        # capacity drop mask
    count_ref[...] = count_ref[...] + jnp.sum(onehot, axis=0, keepdims=True)

    scale_ref[...] = (p_best * keep).astype(scale_ref.dtype)


# -------------------------------------------------------------------------------------------
# Kernel 2: fused expert + shared-experts FFN (fully parallel 2-D grid).
# -------------------------------------------------------------------------------------------
def _ffn_kernel(hs_ref,     # (TT, H)      f32
                scale_ref,  # (TT, 1)      f32
                w_ref,      # (H, 2*TN)    bf16  [expert | shared] columns per column tile
                b_ref,      # (1, 2*TN)    f32
                out_ref):   # (TT, TN)     f32
    tn = out_ref.shape[1]
    hs_bf = hs_ref[...].astype(jnp.bfloat16)
    acc = jnp.dot(hs_bf, w_ref[...],
                  preferred_element_type=jnp.float32) + b_ref[...]   # (TT, 2*TN) f32
    out_ref[...] = (scale_ref[...] * acc[:, :tn] + acc[:, tn:]).astype(out_ref.dtype)


def dist_share_expert_moe(x, params, capacity=100, token_tile=None, col_tile=None):
    """x: (B, S, H) float32.  Returns (B, S, H) float32."""
    B, S, H = x.shape
    T = B * S
    E = params["gate_w"].shape[0]

    if token_tile is None:
        # v7x (64 MiB physical VMEM): 256 at large H; v5e/v6e (128 MiB): 512.
        token_tile = min(T, 256 if H >= 2048 else 512)
    if col_tile is None:
        col_tile = H if H <= 512 else 512
    assert T % token_tile == 0 and (token_tile % 8 == 0 or token_tile == T), (T, token_tile)
    assert H % col_tile == 0 and (col_tile % 128 == 0 or col_tile == H), (H, col_tile)
    n_tok = T // token_tile
    n_col = H // col_tile

    hs = x.reshape(T, H).astype(jnp.float32)

    # Router weights stay f32, pre-transposed (contraction on RHS dim 0).
    gate_wt = params["gate_w"].astype(jnp.float32).T                       # (H, E)
    gate_b = params["gate_b"].reshape(1, E).astype(jnp.float32)

    # Fold the K shared experts into a single linear, pre-transpose, and interleave
    # [expert | shared] output columns per column tile -> one MXU stream per FFN grid step.
    # TODO(synk): in a real model pre-sum / pre-cast / pre-interleave once at load time.
    exp_wt = params["exp_w"].astype(jnp.float32).T                         # (H, H)
    exp_b = params["exp_b"].astype(jnp.float32)                            # (H,)
    sh_wt = jnp.sum(params["shared_w"], axis=0).astype(jnp.float32).T      # (H, H)
    sh_b = jnp.sum(params["shared_b"], axis=0).astype(jnp.float32)         # (H,)

    w_comb = jnp.concatenate(
        [exp_wt.reshape(H, n_col, 1, col_tile),
         sh_wt.reshape(H, n_col, 1, col_tile)], axis=2
    ).reshape(H, 2 * H).astype(jnp.bfloat16)                               # (H, 2H) bf16
    b_comb = jnp.concatenate(
        [exp_b.reshape(n_col, 1, col_tile),
         sh_b.reshape(n_col, 1, col_tile)], axis=1
    ).reshape(1, 2 * H).astype(jnp.float32)                                # (1, 2H) f32

    def vmem_limit(nbytes):
        return int(min(100 * 2 ** 20, max(32 * 2 ** 20, nbytes)))

    # ------------------------------ router / capacity kernel --------------------------------
    router_cost = pl.CostEstimate(
        flops=2 * T * H * E + 2 * T * token_tile * E,
        transcendentals=T * E,
        bytes_accessed=T * H * 4 + T * 4 + H * E * 4 + E * 4)   # weights fetched once
    router_vmem = (2 * (token_tile * H * 4 + token_tile * 128 * 4
                        + H * max(E, 128) * 4 + 128 * 4)
                   + token_tile * token_tile * 2 + 128 * 4 + (2 << 20))

    scale = pl.pallas_call(
        functools.partial(_router_kernel, capacity),
        out_shape=jax.ShapeDtypeStruct((T, 1), jnp.float32),
        grid_spec=pltpu.PrefetchScalarGridSpec(
            num_scalar_prefetch=0,
            grid=(n_tok,),
            in_specs=[
                pl.BlockSpec((token_tile, H), lambda i: (i, 0)),   # hs
                pl.BlockSpec((H, E), lambda i: (0, 0)),            # gate_wt
                pl.BlockSpec((1, E), lambda i: (0, 0)),            # gate_b
            ],
            out_specs=pl.BlockSpec((token_tile, 1), lambda i: (i, 0)),
            scratch_shapes=[pltpu.VMEM((token_tile, token_tile), jnp.bfloat16),
                            pltpu.VMEM((1, E), jnp.float32)],
        ),
        # Token axis carries the per-expert counter -> must stay sequential.
        compiler_params=pltpu.CompilerParams(
            dimension_semantics=("arbitrary",),
            vmem_limit_bytes=vmem_limit(router_vmem)),
        cost_estimate=router_cost,
    )(hs, gate_wt, gate_b)

    # ----------------------------------- fused FFN kernel -----------------------------------
    ffn_cost = pl.CostEstimate(
        flops=4 * T * H * H,
        transcendentals=0,
        bytes_accessed=(T * H * 4 + T * 4                        # hs + scale (resident over j)
                        + n_tok * (2 * H * H * 2 + 2 * H * 4)    # weight/bias slabs per token tile
                        + T * H * 4))                            # output
    ffn_vmem = (2 * (token_tile * H * 4 + token_tile * 128 * 4
                     + H * 2 * col_tile * 2 + 2 * col_tile * 4
                     + token_tile * col_tile * 4) + (2 << 20))

    out = pl.pallas_call(
        _ffn_kernel,
        out_shape=jax.ShapeDtypeStruct((T, H), jnp.float32),
        grid_spec=pltpu.PrefetchScalarGridSpec(
            num_scalar_prefetch=0,
            grid=(n_tok, n_col),
            in_specs=[
                pl.BlockSpec((token_tile, H), lambda i, j: (i, 0)),      # hs
                pl.BlockSpec((token_tile, 1), lambda i, j: (i, 0)),      # scale
                pl.BlockSpec((H, 2 * col_tile), lambda i, j: (0, j)),    # fused weight slab
                pl.BlockSpec((1, 2 * col_tile), lambda i, j: (0, j)),    # fused bias slab
            ],
            out_specs=pl.BlockSpec((token_tile, col_tile), lambda i, j: (i, j)),
        ),
        # No cross-step carry -> both axes parallel (lets v7x use both TensorCores).
        compiler_params=pltpu.CompilerParams(
            dimension_semantics=("parallel", "parallel"),
            vmem_limit_bytes=vmem_limit(ffn_vmem)),
        cost_estimate=ffn_cost,
    )(hs, scale, w_comb, b_comb)

    return out.reshape(B, S, H)


def _reference(x, params, capacity=100):
    """Pure-JAX translation of the PyTorch forward (single device)."""
    B, S, H = x.shape
    hs = x.reshape(-1, H)
    logits = hs @ params["gate_w"].T + params["gate_b"]
    probs = jax.nn.softmax(logits, axis=1)
    E = logits.shape[1]
    best = jnp.argmax(probs, axis=1)
    onehot = jax.nn.one_hot(best, E, dtype=jnp.int32)
    prob_sum = jnp.sum(probs * onehot, axis=1)
    locations = jnp.cumsum(onehot, axis=0) - 1
    mask = onehot * (locations < capacity).astype(jnp.int32)
    loc_sum = jnp.sum(locations * mask, axis=1)
    new_norm = prob_sum[:, None] * mask.astype(probs.dtype)
    loc_onehot = jax.nn.one_hot(loc_sum, capacity, dtype=probs.dtype)
    combine = new_norm[:, :, None] * loc_onehot[:, None, :]        # (T, E, C)
    dispatch = (combine != 0).astype(probs.dtype)
    dispatch2 = jnp.transpose(dispatch, (1, 2, 0)).reshape(E * capacity, -1)
    dispatched = dispatch2 @ hs
    expert_out = dispatched @ params["exp_w"].T + params["exp_b"]
    combined = combine.reshape(hs.shape[0], E * capacity) @ expert_out
    combined = combined.reshape(B, S, H)
    shared = sum(x @ params["shared_w"][k].T + params["shared_b"][k]
                 for k in range(params["shared_w"].shape[0]))
    return combined + shared


if __name__ == "__main__":
    B, S, H, E, K = 2, 8, 32, 8, 2   # batch, seq, hidden_dim, expert_num, shared_expert_num
    CAPACITY = 100

    key = jax.random.PRNGKey(0)
    ks = jax.random.split(key, 8)
    params = {
        "gate_w":   jax.random.normal(ks[0], (E, H), jnp.float32) * 0.1,
        "gate_b":   jax.random.normal(ks[1], (E,),   jnp.float32) * 0.1,
        "exp_w":    jax.random.normal(ks[2], (H, H), jnp.float32) * 0.1,
        "exp_b":    jax.random.normal(ks[3], (H,),   jnp.float32) * 0.1,
        "shared_w": jax.random.normal(ks[4], (K, H, H), jnp.float32) * 0.1,
        "shared_b": jax.random.normal(ks[5], (K, H), jnp.float32) * 0.1,
    }
    x = jax.random.normal(ks[6], (B, S, H), jnp.float32)

    out = jax.block_until_ready(dist_share_expert_moe(x, params, capacity=CAPACITY))
    ref = jax.block_until_ready(_reference(x, params, capacity=CAPACITY))

    assert out.shape == (B, S, H)
    # Tolerance sized for bf16 MXU operands (f32 accumulation) on the FFN path.
    assert jnp.allclose(out, ref, atol=2e-2, rtol=2e-2), float(jnp.max(jnp.abs(out - ref)))

    print("KERNEL_OK")
</pallas_src>

<mosaic_0001>
module attributes {stable_mosaic.version = 11 : i64} {
  func.func @_router_kernel(%arg0: i32, %arg1: memref<16x32xf32, #tpu.memory_space<vmem>>, %arg2: memref<32x8xf32, #tpu.memory_space<vmem>>, %arg3: memref<1x8xf32, #tpu.memory_space<vmem>>, %arg4: memref<16x1xf32, #tpu.memory_space<vmem>>, %arg5: memref<16x16xbf16, #tpu.memory_space<vmem>>, %arg6: memref<1x8xf32, #tpu.memory_space<vmem>>) attributes {dimension_semantics = [#tpu.dimension_semantics<arbitrary>], iteration_bounds = array<i64: 1>, scalar_prefetch = 0 : i64, scratch_operands = 2 : i64, tpu.core_type = #tpu.core_type<tc>, window_params = [{transform_indices = @transform_0, window_bounds = array<i64: 16, 32>}, {pipeline_mode = #tpu.pipeline_mode<synchronous>, transform_indices = @transform_1, window_bounds = array<i64: 32, 8>}, {pipeline_mode = #tpu.pipeline_mode<synchronous>, transform_indices = @transform_2, window_bounds = array<i64: 1, 8>}, {transform_indices = @transform_3, window_bounds = array<i64: 16, 1>}]} {
    %c0_i32 = arith.constant 0 : i32
    %0 = arith.cmpi eq, %arg0, %c0_i32 : i32
    %1 = arith.extui %0 : i1 to i32
    %c0_i32_0 = arith.constant 0 : i32
    %2 = arith.cmpi ne, %1, %c0_i32_0 : i32
    scf.if %2 {
      %cst_24 = arith.constant 0.000000e+00 : f32
      %50 = vector.broadcast %cst_24 : f32 to vector<1x8xf32>
      %c0_25 = arith.constant 0 : index
      %c0_26 = arith.constant 0 : index
      %51 = vector.load %arg6[%c0_25, %c0_26] : memref<1x8xf32, #tpu.memory_space<vmem>>, vector<1x8xf32>
      tpu.vector_store %arg6[%c0_25, %c0_26], %50 {strides = array<i32>} : memref<1x8xf32, #tpu.memory_space<vmem>>, vector<1x8xf32>,
      %52 = tpu.iota {dimensions = array<i32: 0>} : vector<16x16xi32>
      %53 = tpu.iota {dimensions = array<i32: 1>} : vector<16x16xi32>
      %54 = arith.cmpi sge, %52, %53 : vector<16x16xi32>
      %55 = arith.extui %54 : vector<16x16xi1> to vector<16x16xi32>
      %56 = arith.sitofp %55 : vector<16x16xi32> to vector<16x16xf32>
      %57 = arith.truncf %56 : vector<16x16xf32> to vector<16x16xbf16>
      %c0_27 = arith.constant 0 : index
      %c0_28 = arith.constant 0 : index
      %58 = vector.load %arg5[%c0_27, %c0_28] : memref<16x16xbf16, #tpu.memory_space<vmem>>, vector<16x16xbf16>
      tpu.vector_store %arg5[%c0_27, %c0_28], %57 {strides = array<i32>} : memref<16x16xbf16, #tpu.memory_space<vmem>>, vector<16x16xbf16>,
    } else {
    }
    %c0 = arith.constant 0 : index
    %c0_1 = arith.constant 0 : index
    %3 = vector.load %arg1[%c0, %c0_1] : memref<16x32xf32, #tpu.memory_space<vmem>>, vector<16x32xf32>
    %c0_2 = arith.constant 0 : index
    %c0_3 = arith.constant 0 : index
    %4 = vector.load %arg2[%c0_2, %c0_3] : memref<32x8xf32, #tpu.memory_space<vmem>>, vector<32x8xf32>
    %cst = arith.constant dense<0.000000e+00> : vector<16x8xf32>
    %5 = tpu.matmul %3, %4, %cst {dimension_numbers = #tpu.dot_dimension_numbers<[1], [0], [0], [1], [0, 0, 1, 1], [], []>} : vector<16x32xf32>, vector<32x8xf32>, vector<16x8xf32> -> vector<16x8xf32>
    %c0_4 = arith.constant 0 : index
    %c0_5 = arith.constant 0 : index
    %6 = vector.load %arg3[%c0_4, %c0_5] : memref<1x8xf32, #tpu.memory_space<vmem>>, vector<1x8xf32>
    %7 = vector.broadcast %6 : vector<1x8xf32> to vector<16x8xf32>
    %8 = arith.addf %5, %7 : vector<16x8xf32>
    %cst_6 = arith.constant dense<0xFF800000> : vector<16xf32>
    %9 = vector.multi_reduction <maximumf>, %8, %cst_6 [1] : vector<16x8xf32> to vector<16xf32>
    %10 = vector.shape_cast %9 : vector<16xf32> to vector<16x1xf32>
    %11 = vector.broadcast %10 : vector<16x1xf32> to vector<16x8xf32>
    %12 = arith.subf %8, %11 : vector<16x8xf32>
    %13 = math.exp %12 : vector<16x8xf32>
    %cst_7 = arith.constant dense<0.000000e+00> : vector<16xf32>
    %14 = vector.multi_reduction <add>, %13, %cst_7 [1] : vector<16x8xf32> to vector<16xf32>
    %15 = vector.shape_cast %14 : vector<16xf32> to vector<16x1xf32>
    %16 = tpu.reciprocal %15 {approx = true} : vector<16x1xf32> -> vector<16x1xf32>
    %17 = tpu.iota {dimensions = array<i32: 1>} : vector<16x8xi32>
    %18 = vector.broadcast %10 : vector<16x1xf32> to vector<16x8xf32>
    %19 = arith.cmpf oeq, %8, %18 : vector<16x8xf32>
    %c8_i32 = arith.constant 8 : i32
    %20 = vector.broadcast %c8_i32 : i32 to vector<16x8xi32>
    %21 = arith.select %19, %17, %20 : vector<16x8xi1>, vector<16x8xi32>
    %cst_8 = arith.constant dense<2147483647> : vector<16xi32>
    %22 = vector.multi_reduction <minsi>, %21, %cst_8 [1] : vector<16x8xi32> to vector<16xi32>
    %23 = vector.shape_cast %22 : vector<16xi32> to vector<16x1xi32>
    %24 = vector.broadcast %23 : vector<16x1xi32> to vector<16x8xi32>
    %25 = arith.cmpi eq, %17, %24 : vector<16x8xi32>
    %26 = arith.extui %25 : vector<16x8xi1> to vector<16x8xi32>
    %27 = arith.sitofp %26 : vector<16x8xi32> to vector<16x8xf32>
    %c0_9 = arith.constant 0 : index
    %c0_10 = arith.constant 0 : index
    %28 = vector.load %arg5[%c0_9, %c0_10] : memref<16x16xbf16, #tpu.memory_space<vmem>>, vector<16x16xbf16>
    %29 = arith.truncf %27 : vector<16x8xf32> to vector<16x8xbf16>
    %cst_11 = arith.constant dense<0.000000e+00> : vector<16x8xf32>
    %30 = tpu.matmul %28, %29, %cst_11 {dimension_numbers = #tpu.dot_dimension_numbers<[1], [0], [0], [1], [0, 0, 1, 1], [], []>} : vector<16x16xbf16>, vector<16x8xbf16>, vector<16x8xf32> -> vector<16x8xf32>
    %c0_12 = arith.constant 0 : index
    %c0_13 = arith.constant 0 : index
    %31 = vector.load %arg6[%c0_12, %c0_13] : memref<1x8xf32, #tpu.memory_space<vmem>>, vector<1x8xf32>
    %32 = vector.broadcast %31 : vector<1x8xf32> to vector<16x8xf32>
    %33 = arith.addf %32, %30 : vector<16x8xf32>
    %cst_14 = arith.constant 1.000000e+00 : f32
    %34 = vector.broadcast %cst_14 : f32 to vector<16x8xf32>
    %35 = arith.subf %33, %34 : vector<16x8xf32>
    %36 = arith.mulf %35, %27 : vector<16x8xf32>
    %cst_15 = arith.constant dense<0.000000e+00> : vector<16xf32>
    %37 = vector.multi_reduction <add>, %36, %cst_15 [1] : vector<16x8xf32> to vector<16xf32>
    %38 = vector.shape_cast %37 : vector<16xf32> to vector<16x1xf32>
    %cst_16 = arith.constant 1.000000e+02 : f32
    %39 = vector.broadcast %cst_16 : f32 to vector<16x1xf32>
    %40 = arith.cmpf olt, %38, %39 : vector<16x1xf32>
    %41 = arith.extui %40 : vector<16x1xi1> to vector<16x1xi32>
    %42 = arith.sitofp %41 : vector<16x1xi32> to vector<16x1xf32>
    %c0_17 = arith.constant 0 : index
    %c0_18 = arith.constant 0 : index
    %43 = vector.load %arg6[%c0_17, %c0_18] : memref<1x8xf32, #tpu.memory_space<vmem>>, vector<1x8xf32>
    %cst_19 = arith.constant dense<0.000000e+00> : vector<8xf32>
    %44 = vector.multi_reduction <add>, %27, %cst_19 [0] : vector<16x8xf32> to vector<8xf32>
    %45 = vector.shape_cast %44 : vector<8xf32> to vector<1x8xf32>
    %46 = arith.addf %43, %45 : vector<1x8xf32>
    %c0_20 = arith.constant 0 : index
    %c0_21 = arith.constant 0 : index
    %47 = vector.load %arg6[%c0_20, %c0_21] : memref<1x8xf32, #tpu.memory_space<vmem>>, vector<1x8xf32>
    tpu.vector_store %arg6[%c0_20, %c0_21], %46 {strides = array<i32>} : memref<1x8xf32, #tpu.memory_space<vmem>>, vector<1x8xf32>,
    %48 = arith.mulf %16, %42 : vector<16x1xf32>
    %c0_22 = arith.constant 0 : index
    %c0_23 = arith.constant 0 : index
    %49 = vector.load %arg4[%c0_22, %c0_23] : memref<16x1xf32, #tpu.memory_space<vmem>>, vector<16x1xf32>
    tpu.vector_store %arg4[%c0_22, %c0_23], %48 {strides = array<i32>} : memref<16x1xf32, #tpu.memory_space<vmem>>, vector<16x1xf32>,
    return
  }
  func.func @transform_0(%arg0: i32) -> (i32, i32) {
    %c0_i32 = arith.constant 0 : i32
    %c0_i32_0 = arith.constant 0 : i32
    return %arg0, %c0_i32 : i32, i32
  }
  func.func @transform_1(%arg0: i32) -> (i32, i32) {
    %c0_i32 = arith.constant 0 : i32
    %c0_i32_0 = arith.constant 0 : i32
    %c0_i32_1 = arith.constant 0 : i32
    return %c0_i32, %c0_i32_0 : i32, i32
  }
  func.func @transform_2(%arg0: i32) -> (i32, i32) {
    %c0_i32 = arith.constant 0 : i32
    %c0_i32_0 = arith.constant 0 : i32
    %c0_i32_1 = arith.constant 0 : i32
    return %c0_i32, %c0_i32_0 : i32, i32
  }
  func.func @transform_3(%arg0: i32) -> (i32, i32) {
    %c0_i32 = arith.constant 0 : i32
    %c0_i32_0 = arith.constant 0 : i32
    return %arg0, %c0_i32 : i32, i32
  }
}

</mosaic_0001>

<llo_original>
// kernel: tpu_custom_call.1
$region0: #{tpu_custom_call.1}
  #allocation0 [shape = 'u32[]', space=smem, size = 0x4, offset = 0x4, fixed_abs, tag = 'smem constant byte address 0x4 - core index']
  #allocation1 [shape = 'u32[144,128]{1,0:T(1,128)}', space=vmem, size = 0x12000, scoped, tag = 'internal scratch']
  #allocation2 [shape = 'bf16[16,16]{1,0:T(16,128)(2,1)}', space=vmem, size = 0x1000, scoped, tag = 'scratch operand']
  #allocation3 [shape = 'f32[1,8]{1,0:T(1,128)}', space=vmem, size = 0x200, scoped, tag = 'scratch operand']
  %s0 = inlined_call_operand.vmem [shape: f32[16,32], index: 0, kind: input, shape index: {}]
  %s1 = inlined_call_operand.vmem [shape: f32[32,8], index: 1, kind: input, shape index: {}]
  %s2 = inlined_call_operand.vmem [shape: f32[1,8], index: 2, kind: input, shape index: {}]
  %s3 = inlined_call_operand.vmem [shape: f32[16,1], index: 3, kind: output, shape index: {}]
  %s4 = sld [smem:[#allocation0]]
  $region26: #{tpu_custom_call.1} parent=0
    _
  %s6 = ssub.s32 1, %s4
  %s7 = scalar_select 0, %s6, %s4
  // Predicated region
  $region2: #{tpu_custom_call.1} parent=0 // pred_check
    _
  $region3: #{tpu_custom_call.1} parent=0 // pred_check_branch
    %9 = sbr.rel (0) target = $region5
  $region4: #{tpu_custom_call.1} parent=0 // pred_region
    _
  $region5: #{tpu_custom_call.1} parent=0 // pred_fallthru
    _
  // Predicated region
  $region6: #{tpu_custom_call.1} parent=0 // pred_check
    _
  $region7: #{tpu_custom_call.1} parent=0 // pred_check_branch
    %11 = sbr.rel (0) target = $region9
  $region8: #{tpu_custom_call.1} parent=0 // pred_region
    _
  $region9: #{tpu_custom_call.1} parent=0 // pred_fallthru
    _
  // Predicated region
  $region10: #{tpu_custom_call.1} parent=0 // pred_check
    _
  $region11: #{tpu_custom_call.1} parent=0 // pred_check_branch
    %13 = sbr.rel (0) target = $region13
  $region12: #{tpu_custom_call.1} parent=0 // pred_region
    _
  $region13: #{tpu_custom_call.1} parent=0 // pred_fallthru
    _
  %p15 = scmp.eq.s32.totalorder 0, 0
  // Predicated region
  $region14: #{tpu_custom_call.1} parent=0 // pred_check
    %p16 = pneg %p15
  $region15: #{tpu_custom_call.1} parent=0 // pred_check_branch
    %18 = sbr.rel (%p16) target = $region17
  $region16: #{tpu_custom_call.1} parent=0 // pred_region
    %vm19 = vcmask 57344
    %20 = vst.msk [vmem:[#allocation3] sm:$0x1] %vm19, 0.0
    %v21 = vlaneseq
    %v22 = vshrl.u32 %v21, 7
    %v23 = vadd.s32 %v22, 8
    %v24 = vlaneseq
    %v25 = vand.u32 %v24, 127
    %vm26 = vcmp.ge.s32.totalorder %v22, %v25
    %vm27 = vcmp.ge.s32.totalorder %v23, %v25
    %v28 = vsel %vm26, 1, 0
    %v29 = vsel %vm27, 1, 0
    %v30 = vcvt.s32.f32 %v28
    %v31 = vcvt.s32.f32 %v29
    %v32 = vpack.c.bf16 %v31, %v30
    %vm33 = vcmask 130048
    %34 = vst.msk [vmem:[#allocation2] sm:$0xff] %vm33, %v32
  $region17: #{tpu_custom_call.1} parent=0 // pred_fallthru
    _
  %v35 = vld [vmem:[%s0] sm:$0xff]
  %v36 = vld [vmem:[%s0 + $0x8] sm:$0xff]
  %v37 = vld [vmem:[%s1] sm:$0xff]
  %v38 = vld [vmem:[%s1 + $0x8] sm:$0xff]
  %v39 = vld [vmem:[%s1 + $0x10] sm:$0xff]
  %v40 = vld [vmem:[%s1 + $0x18] sm:$0xff]
  %v41 = vld [vmem:[%s2] sm:$0x1]
  %v43 = vlaneseq
  %v44 = vshrl.u32 %v43, 7
  %v45 = vsub.s32 0, %v44
  %v46 = vrot.slane %v41, %v45
  %vm48 = vcmask 261120
  %v50 = vsel %vm48, %v35, 0
  %v53 = vsel %vm48, %v36, 0
  %55 = vmatprep.subr.mxu0 0.0
  %56 = vmatpush1.msra.mxu0 %v37
  %57 = vmatprep.subr.mxu0 0.0
  %58 = vmatpush1.msra.mxu0 %v38
  %59 = vmatprep.subr.mxu0 0.0
  %60 = vmatpush1.msra.mxu0 %v39
  %61 = vmatprep.subr.mxu0 0.0
  %62 = vmatpush1.msra.mxu0 %v40
  %63 = vmatprep.subr.mxu0 0.0
  %64 = vmatpush1.msra.mxu0 0.0
  %65 = vmatprep.subr.mxu0 0.0
  %66 = vmatpush1.msra.mxu0 0.0
  %67 = vmatprep.subr.mxu0 0.0
  %68 = vmatpush1.msra.mxu0 0.0
  %69 = vmatprep.subr.mxu0 0.0
  %70 = vmatpush1.msra.mxu0 0.0
  %71 = vmatprep.subr.mxu0 0.0
  %72 = vmatpush1.msra.mxu0 0.0
  %73 = vmatprep.subr.mxu0 0.0
  %74 = vmatpush1.msra.mxu0 0.0
  %75 = vmatprep.subr.mxu0 0.0
  %76 = vmatpush1.msra.mxu0 0.0
  %77 = vmatprep.subr.mxu0 0.0
  %78 = vmatpush1.msra.mxu0 0.0
  %79 = vmatprep.subr.mxu0 0.0
  %80 = vmatpush1.msra.mxu0 0.0
  %81 = vmatprep.subr.mxu0 0.0
  %82 = vmatpush1.msra.mxu0 0.0
  %83 = vmatprep.subr.mxu0 0.0
  %84 = vmatpush1.msra.mxu0 0.0
  %85 = vmatprep.subr.mxu0 0.0
  %86 = vmatpush1.msra.mxu0 0.0
  %87 = vmatprep.subr.mxu0 0.0
  %88 = vmatpush1.msra.mxu0 0.0
  %89 = vmatprep.subr.mxu0 0.0
  %90 = vmatpush1.msra.mxu0 0.0
  %91 = vmatprep.subr.mxu0 0.0
  %92 = vmatpush1.msra.mxu0 0.0
  %93 = vmatprep.subr.mxu0 0.0
  %94 = vmatpush1.msra.mxu0 0.0
  %95 = vmatprep.subr.mxu0 0.0
  %96 = vmatpush1.msra.mxu0 0.0
  %97 = vmatprep.subr.mxu0 0.0
  %98 = vmatpush1.msra.mxu0 0.0
  %99 = vmatprep.subr.mxu0 0.0
  %100 = vmatpush1.msra.mxu0 0.0
  %101 = vmatprep.subr.mxu0 0.0
  %102 = vmatpush1.msra.mxu0 0.0
  %103 = vmatprep.subr.mxu0 0.0
  %104 = vmatpush1.msra.mxu0 0.0
  %105 = vmatprep.subr.mxu0 0.0
  %106 = vmatpush1.msra.mxu0 0.0
  %107 = vmatprep.subr.mxu0 0.0
  %108 = vmatpush1.msra.mxu0 0.0
  %109 = vmatprep.subr.mxu0 0.0
  %110 = vmatpush1.msra.mxu0 0.0
  %111 = vmatprep.subr.mxu0 0.0
  %112 = vmatpush1.msra.mxu0 0.0
  %113 = vmatprep.subr.mxu0 0.0
  %114 = vmatpush1.msra.mxu0 0.0
  %115 = vmatprep.subr.mxu0 0.0
  %116 = vmatpush1.msra.mxu0 0.0
  %117 = vmatprep.subr.mxu0 0.0
  %118 = vmatpush1.msra.mxu0 0.0
  %119 = vmatprep.mubr.f32.mxu0 0.0
  %120 = vmatmul.mubr.f32.gmra.mrb[0].mxu0 %v50
  %v121 = vpop.f32.mrb[0].mxu0
  %v122 = vadd.f32 %v46, %v121
  %v123 = vpop.f32.mrb[0].mxu0
  %124 = vmatprep.mubr.f32.mxu0 0.0
  %125 = vmatmul.mubr.f32.gmra.mrb[0].mxu0 %v53
  %v126 = vpop.f32.mrb[0].mxu0
  %v127 = vadd.f32 %v46, %v126
  %v128 = vpop.f32.mrb[0].mxu0
  %129 = vdwg.mxu0
  %vm130 = vcmask 64512
  %v131 = vsel %vm130, %v122, -inf
  %132 = vmax.xlane.f32.xlu0 %v131
  %v133 = vpop.xlane.xlu0 %132
  %v134 = vsel %vm130, %v127, -inf
  %135 = vmax.xlane.f32.xlu0 %v134
  %v136 = vpop.xlane.xlu0 %135
  %v137 = vsub.f32 %v122, %v133
  %v138 = vsub.f32 %v127, %v136
  %v139 = vmul.f32 %v137, 1.442695
  %v140 = vpow.pop %v139
  %v141 = vmul.f32 %v138, 1.442695
  %v142 = vpow.pop %v141
  %v143 = vsel %vm130, %v140, 0.0
  %144 = vadd.xlane.f32.xlu0 %v143
  %v145 = vpop.xlane.xlu0 %144
  %v146 = vsel %vm130, %v142, 0.0
  %147 = vadd.xlane.f32.xlu0 %v146
  %v148 = vpop.xlane.xlu0 %147
  %v149 = vrcp.pop %v145
  %v150 = vrcp.pop %v148
  %v151 = vlaneseq
  %v152 = vand.u32 %v151, 127
  %vm153 = vcmp.eq.f32.partialorder %v122, %v133
  %vm154 = vcmp.eq.f32.partialorder %v127, %v136
  %v155 = vsel %vm153, %v152, 8
  %v156 = vsel %vm154, %v152, 8
  %v157 = vsel %vm130, %v155, 2147483647
  %v158 = vand.u32 %v157, 65535
  %v159 = vshra.s32 %v157, 16
  %v160 = vcvt.s32.f32 %v158
  %v161 = vcvt.s32.f32 %v159
  %162 = vmin.xlane.f32.xlu0 %v161
  %v163 = vpop.xlane.xlu0 %162
  %vm164 = vcmp.eq.f32.partialorder %v161, %v163
  %v165 = vsel %vm164, %v160, inf
  %166 = vmin.xlane.f32.xlu0 %v165
  %v167 = vpop.xlane.xlu0 %166
  %v168 = vcvt.f32.s32 %v167
  %v169 = vcvt.f32.s32 %v163
  %v170 = vshll.u32 %v169, 16
  %v171 = vadd.s32 %v170, %v168
  %v172 = vsel %vm130, %v156, 2147483647
  %v173 = vand.u32 %v172, 65535
  %v174 = vshra.s32 %v172, 16
  %v175 = vcvt.s32.f32 %v173
  %v176 = vcvt.s32.f32 %v174
  %177 = vmin.xlane.f32.xlu0 %v176
  %v178 = vpop.xlane.xlu0 %177
  %vm179 = vcmp.eq.f32.partialorder %v176, %v178
  %v180 = vsel %vm179, %v175, inf
  %181 = vmin.xlane.f32.xlu0 %v180
  %v182 = vpop.xlane.xlu0 %181
  %v183 = vcvt.f32.s32 %v182
  %v184 = vcvt.f32.s32 %v178
  %v185 = vshll.u32 %v184, 16
  %v186 = vadd.s32 %v185, %v183
  %vm187 = vcmp.eq.s32.totalorder %v152, %v171
  %vm188 = vcmp.eq.s32.totalorder %v152, %v186
  %v189 = vsel %vm187, 1, 0
  %v190 = vsel %vm188, 1, 0
  %v191 = vcvt.s32.f32 %v189
  %v192 = vcvt.s32.f32 %v190
  %v193 = vld [vmem:[#allocation2] sm:$0xff]
  %v194 = vpack.c.bf16 %v192, %v191
  %vm195 = vcmask 130048
  %v197 = vsel %vm195, %v193, 0
  %199 = vmatprep.subr.bf16.mxu0 0
  %200 = vmatpush1.bf16.msra.mxu0 %v194
  %201 = vmatprep.subr.bf16.mxu0 0
  %202 = vmatpush1.bf16.msra.mxu0 0
  %203 = vmatprep.subr.bf16.mxu0 0
  %204 = vmatpush1.bf16.msra.mxu0 0
  %205 = vmatprep.subr.bf16.mxu0 0
  %206 = vmatpush1.bf16.msra.mxu0 0
  %207 = vmatprep.subr.bf16.mxu0 0
  %208 = vmatpush1.bf16.msra.mxu0 0
  %209 = vmatprep.subr.bf16.mxu0 0
  %210 = vmatpush1.bf16.msra.mxu0 0
  %211 = vmatprep.subr.bf16.mxu0 0
  %212 = vmatpush1.bf16.msra.mxu0 0
  %213 = vmatprep.subr.bf16.mxu0 0
  %214 = vmatpush1.bf16.msra.mxu0 0
  %215 = vmatprep.subr.bf16.mxu0 0
  %216 = vmatpush1.bf16.msra.mxu0 0
  %217 = vmatprep.subr.bf16.mxu0 0
  %218 = vmatpush1.bf16.msra.mxu0 0
  %219 = vmatprep.subr.bf16.mxu0 0
  %220 = vmatpush1.bf16.msra.mxu0 0
  %221 = vmatprep.subr.bf16.mxu0 0
  %222 = vmatpush1.bf16.msra.mxu0 0
  %223 = vmatprep.subr.bf16.mxu0 0
  %224 = vmatpush1.bf16.msra.mxu0 0
  %225 = vmatprep.subr.bf16.mxu0 0
  %226 = vmatpush1.bf16.msra.mxu0 0
  %227 = vmatprep.subr.bf16.mxu0 0
  %228 = vmatpush1.bf16.msra.mxu0 0
  %229 = vmatprep.subr.bf16.mxu0 0
  %230 = vmatpush1.bf16.msra.mxu0 0
  %231 = vmatprep.mubr.bf16.mxu0 0
  %232 = vmatmul.mubr.bf16.gmra.mrb[0].mxu0 %v197
  %v233 = vpop.f32.mrb[0].mxu0
  %v234 = vadd.f32 0.0, %v233
  %v235 = vpop.f32.mrb[0].mxu0
  %v236 = vpop.f32.mrb[0].mxu0
  %v237 = vadd.f32 0.0, %v236
  %v238 = vpop.f32.mrb[0].mxu0
  %239 = vdwg.mxu0
  %v240 = vld [vmem:[#allocation3] sm:$0x1]
  %v242 = vlaneseq
  %v243 = vshrl.u32 %v242, 7
  %v244 = vsub.s32 0, %v243
  %v245 = vrot.slane %v240, %v244
  %v247 = vadd.f32 %v245, %v234
  %v248 = vadd.f32 %v245, %v237
  %v249 = vsub.f32 %v247, 1.0
  %v250 = vsub.f32 %v248, 1.0
  %v251 = vmul.f32 %v249, %v191
  %v252 = vmul.f32 %v250, %v192
  %v253 = vsel %vm130, %v251, 0.0
  %254 = vadd.xlane.f32.xlu0 %v253
  %v255 = vpop.xlane.xlu0 %254
  %v256 = vsel %vm130, %v252, 0.0
  %257 = vadd.xlane.f32.xlu0 %v256
  %v258 = vpop.xlane.xlu0 %257
  %vm259 = vcmp.lt.f32.partialorder %v255, 100.0
  %vm260 = vcmp.lt.f32.partialorder %v258, 100.0
  %v261 = vsel %vm259, 1, 0
  %v262 = vsel %vm260, 1, 0
  %v263 = vcvt.s32.f32 %v261
  %v264 = vcvt.s32.f32 %v262
  %v265 = vsel %vm130, %v191, 0.0
  %v266 = vsel %vm130, %v192, 0.0
  %v267 = vadd.f32 %v265, %v266
  %v268 = vrot.slane %v267, 4
  %v269 = vadd.f32 %v267, %v268
  %v270 = vrot.slane %v269, 2
  %v271 = vadd.f32 %v269, %v270
  %v272 = vrot.slane %v271, 1
  %v273 = vadd.f32 %v271, %v272
  %v274 = vadd.f32 %v240, %v273
  %vm275 = vcmask 57344
  %276 = vst.msk [vmem:[#allocation3] sm:$0x1] %vm275, %v274
  %v277 = vmul.f32 %v149, %v263
  %v278 = vmul.f32 %v150, %v264
  %vm279 = vcmask 7168
  %280 = vst.msk [vmem:[%s3] sm:$0xff] %vm279, %v277
  %281 = vst.msk [vmem:[%s3 + $0x8] sm:$0xff] %vm279, %v278
  // Predicated region
  $region18: #{tpu_custom_call.1} parent=0 // pred_check
    _
  $region19: #{tpu_custom_call.1} parent=0 // pred_check_branch
    %283 = sbr.rel (0) target = $region21
  $region20: #{tpu_custom_call.1} parent=0 // pred_region
    _
  $region21: #{tpu_custom_call.1} parent=0 // pred_fallthru
    _
  // Predicated region
  $region22: #{tpu_custom_call.1} parent=0 // pred_check
    _
  $region23: #{tpu_custom_call.1} parent=0 // pred_check_branch
    %285 = sbr.rel (0) target = $region25
  $region24: #{tpu_custom_call.1} parent=0 // pred_region
    _
  $region25: #{tpu_custom_call.1} parent=0 // pred_fallthru
    _

</llo_original>
